<compile_context>
chip_gen: v7x
topology: tpu7x:2x2x1
jax: 0.10.0
libtpu: 0.0.40
codegen_flags: <defaults>
</compile_context>

<pallas_src>
import jax
import jax.numpy as jnp
from jax.experimental import pallas as pl
from jax.experimental.pallas import tpu as pltpu

_LANE = 128
_NEG_SLOPE = 0.01  # PyTorch F.leaky_relu default negative_slope


def _round_up(x, m):
    return ((x + m - 1) // m) * m


def _mlp_disc_kernel(x_ref, w1_ref, b1_ref, w2_ref, b2_ref, w3_ref, b3_ref, o_ref):
    """sigmoid(leaky_relu(leaky_relu(x@W1+b1)@W2+b2)@W3+b3) for one batch tile.

    Dot operands are bf16 (MXU-native) with f32 accumulation; bias adds,
    leaky_relu and the sigmoid epilogue run in f32 on the VPU/EUP.
    """
    x = x_ref[...].astype(jnp.bfloat16)

    h = jnp.dot(x, w1_ref[...], preferred_element_type=jnp.float32) + b1_ref[...]
    h = jnp.where(h > 0, h, _NEG_SLOPE * h)

    h = jnp.dot(h.astype(jnp.bfloat16), w2_ref[...],
                preferred_element_type=jnp.float32) + b2_ref[...]
    h = jnp.where(h > 0, h, _NEG_SLOPE * h)

    z = jnp.dot(h.astype(jnp.bfloat16), w3_ref[...],
                preferred_element_type=jnp.float32) + b3_ref[...]
    # Overflow-safe sigmoid: a single EUP tanh push per vreg.
    o_ref[...] = 0.5 * (1.0 + jnp.tanh(0.5 * z))


def prepare_params(w1, b1, w2, b2, w3, b3):
    """One-time parameter prep (hoist out of the per-forward path).

    The hidden dim is zero-padded to a multiple of 128 lanes (exact through
    linear + leaky_relu: padded weight columns/rows and padded bias entries are
    all zero). Weights are stored as bf16 dot operands; biases stay f32 and are
    added inside the kernel, so they are never rounded to bf16.
    """
    in_dim, hid = w1.shape
    out_dim = w3.shape[1]
    hid_pad = _round_up(hid, _LANE)

    w1p = jnp.zeros((in_dim, hid_pad), jnp.bfloat16).at[:, :hid].set(
        w1.astype(jnp.bfloat16))
    b1p = jnp.zeros((1, hid_pad), jnp.float32).at[0, :hid].set(
        b1.reshape(-1).astype(jnp.float32))

    w2p = jnp.zeros((hid_pad, hid_pad), jnp.bfloat16).at[:hid, :hid].set(
        w2.astype(jnp.bfloat16))
    b2p = jnp.zeros((1, hid_pad), jnp.float32).at[0, :hid].set(
        b2.reshape(-1).astype(jnp.float32))

    w3p = jnp.zeros((hid_pad, out_dim), jnp.bfloat16).at[:hid, :].set(
        w3.astype(jnp.bfloat16))
    b3p = b3.reshape(1, out_dim).astype(jnp.float32)

    return (w1p, b1p, w2p, b2p, w3p, b3p)


def simple_discriminator_forward(x, params, *, block_batch=2048):
    """Full forward pass of SimpleDescriminator in one gridded Pallas kernel."""
    w1p, b1p, w2p, b2p, w3p, b3p = params
    batch, in_dim = x.shape
    hid_pad = w1p.shape[1]
    out_dim = w3p.shape[1]

    # Batch tile: large to amortize ~0.35us per-grid-step overhead; multiple of 8
    # (f32 sublane constraint). Per-tile VMEM footprint stays far below 32 MiB.
    tb = _round_up(min(block_batch, batch), 8)
    b_pad = _round_up(batch, tb)

    x = x.astype(jnp.float32)
    if b_pad != batch:
        # Row padding only (no lane inflation); padded rows are sliced off below.
        x = jnp.pad(x, ((0, b_pad - batch), (0, 0)))

    out = pl.pallas_call(
        _mlp_disc_kernel,
        out_shape=jax.ShapeDtypeStruct((b_pad, out_dim), jnp.float32),
        grid=(b_pad // tb,),
        in_specs=[
            # x streams per batch tile; last dim == full array dim (no 128 pad).
            pl.BlockSpec((tb, in_dim), lambda i: (i, 0)),
            # Weights/biases: constant index_map -> fetched once, VMEM resident.
            # TODO(synk): for hidden_dims >~2k on v7x (64 MiB VMEM) use
            # pipeline_mode=pl.Buffered(1) on the weight specs or tile the K dim.
            pl.BlockSpec((in_dim, hid_pad), lambda i: (0, 0)),
            pl.BlockSpec((1, hid_pad), lambda i: (0, 0)),
            pl.BlockSpec((hid_pad, hid_pad), lambda i: (0, 0)),
            pl.BlockSpec((1, hid_pad), lambda i: (0, 0)),
            pl.BlockSpec((hid_pad, out_dim), lambda i: (0, 0)),
            pl.BlockSpec((1, out_dim), lambda i: (0, 0)),
        ],
        # Output keeps its true width: HBM writeback is out_dim columns per row,
        # not a 128-lane padded slab, and no wrapper-side column slice is needed.
        out_specs=pl.BlockSpec((tb, out_dim), lambda i: (i, 0)),
        compiler_params=pltpu.CompilerParams(
            dimension_semantics=("parallel",),  # batch tiles shard across TCs (v7x)
            vmem_limit_bytes=32 * 1024 * 1024,
        ),
    )(x, w1p, b1p, w2p, b2p, w3p, b3p)

    return out[:batch]


def init_params(key, input_dim, hidden_dims, output_dim):
    """Deterministic parameter init (shapes match the nn.Linear layers)."""
    ks = jax.random.split(key, 6)

    def linear_init(kw, kb, fan_in, fan_out):
        bound = 1.0 / jnp.sqrt(fan_in)
        w = jax.random.uniform(kw, (fan_in, fan_out), jnp.float32, -bound, bound)
        b = jax.random.uniform(kb, (fan_out,), jnp.float32, -bound, bound)
        return w, b

    w1, b1 = linear_init(ks[0], ks[1], input_dim, hidden_dims)
    w2, b2 = linear_init(ks[2], ks[3], hidden_dims, hidden_dims)
    w3, b3 = linear_init(ks[4], ks[5], hidden_dims, output_dim)
    return w1, b1, w2, b2, w3, b3


def reference_forward(x, w1, b1, w2, b2, w3, b3):
    """Plain-JAX f32 reference for a sanity check."""
    h = x @ w1 + b1
    h = jnp.where(h > 0, h, _NEG_SLOPE * h)
    h = h @ w2 + b2
    h = jnp.where(h > 0, h, _NEG_SLOPE * h)
    z = h @ w3 + b3
    return jax.nn.sigmoid(z)


if __name__ == "__main__":
    key = jax.random.PRNGKey(0)
    batch, input_dim, hidden_dims, output_dim = 8, 16, 32, 1

    k_x, k_p = jax.random.split(key)
    x = jax.random.normal(k_x, (batch, input_dim), jnp.float32)
    raw_params = init_params(k_p, input_dim, hidden_dims, output_dim)

    # One-time prep (padded/bf16 weights, f32 biases) hoisted out of the forward.
    params = prepare_params(*raw_params)
    fwd = jax.jit(simple_discriminator_forward)

    out = jax.block_until_ready(fwd(x, params))

    ref = reference_forward(x, *raw_params)
    assert out.shape == (batch, output_dim)
    # bf16 dot operands (f32 accumulation) vs f32 reference -> loose tolerance.
    assert jnp.allclose(out, ref, atol=2e-2, rtol=2e-2)
    print("KERNEL_OK")
</pallas_src>

<mosaic_0001>
module attributes {stable_mosaic.version = 11 : i64} {
  func.func @_mlp_disc_kernel(%arg0: i32, %arg1: memref<8x16xf32, #tpu.memory_space<vmem>>, %arg2: memref<16x128xbf16, #tpu.memory_space<vmem>>, %arg3: memref<1x128xf32, #tpu.memory_space<vmem>>, %arg4: memref<128x128xbf16, #tpu.memory_space<vmem>>, %arg5: memref<1x128xf32, #tpu.memory_space<vmem>>, %arg6: memref<128x1xbf16, #tpu.memory_space<vmem>>, %arg7: memref<1x1xf32, #tpu.memory_space<vmem>>, %arg8: memref<8x1xf32, #tpu.memory_space<vmem>>) attributes {dimension_semantics = [#tpu.dimension_semantics<parallel>], iteration_bounds = array<i64: 1>, scalar_prefetch = 0 : i64, scratch_operands = 0 : i64, tpu.core_type = #tpu.core_type<tc>, window_params = [{transform_indices = @transform_0, window_bounds = array<i64: 8, 16>}, {pipeline_mode = #tpu.pipeline_mode<synchronous>, transform_indices = @transform_1, window_bounds = array<i64: 16, 128>}, {pipeline_mode = #tpu.pipeline_mode<synchronous>, transform_indices = @transform_2, window_bounds = array<i64: 1, 128>}, {pipeline_mode = #tpu.pipeline_mode<synchronous>, transform_indices = @transform_3, window_bounds = array<i64: 128, 128>}, {pipeline_mode = #tpu.pipeline_mode<synchronous>, transform_indices = @transform_4, window_bounds = array<i64: 1, 128>}, {pipeline_mode = #tpu.pipeline_mode<synchronous>, transform_indices = @transform_5, window_bounds = array<i64: 128, 1>}, {pipeline_mode = #tpu.pipeline_mode<synchronous>, transform_indices = @transform_6, window_bounds = array<i64: 1, 1>}, {transform_indices = @transform_7, window_bounds = array<i64: 8, 1>}]} {
    %c0 = arith.constant 0 : index
    %c0_0 = arith.constant 0 : index
    %0 = vector.load %arg1[%c0, %c0_0] : memref<8x16xf32, #tpu.memory_space<vmem>>, vector<8x16xf32>
    %1 = arith.truncf %0 : vector<8x16xf32> to vector<8x16xbf16>
    %c0_1 = arith.constant 0 : index
    %c0_2 = arith.constant 0 : index
    %2 = vector.load %arg2[%c0_1, %c0_2] : memref<16x128xbf16, #tpu.memory_space<vmem>>, vector<16x128xbf16>
    %cst = arith.constant dense<0.000000e+00> : vector<8x128xf32>
    %3 = tpu.matmul %1, %2, %cst {dimension_numbers = #tpu.dot_dimension_numbers<[1], [0], [0], [1], [0, 0, 1, 1], [], []>} : vector<8x16xbf16>, vector<16x128xbf16>, vector<8x128xf32> -> vector<8x128xf32>
    %c0_3 = arith.constant 0 : index
    %c0_4 = arith.constant 0 : index
    %4 = vector.load %arg3[%c0_3, %c0_4] : memref<1x128xf32, #tpu.memory_space<vmem>>, vector<1x128xf32>
    %5 = vector.broadcast %4 : vector<1x128xf32> to vector<8x128xf32>
    %6 = arith.addf %3, %5 : vector<8x128xf32>
    %cst_5 = arith.constant 0.000000e+00 : f32
    %7 = vector.broadcast %cst_5 : f32 to vector<8x128xf32>
    %8 = arith.cmpf ogt, %6, %7 : vector<8x128xf32>
    %cst_6 = arith.constant 0.00999999977 : f32
    %9 = vector.broadcast %cst_6 : f32 to vector<8x128xf32>
    %10 = arith.mulf %9, %6 : vector<8x128xf32>
    %11 = arith.select %8, %6, %10 : vector<8x128xi1>, vector<8x128xf32>
    %12 = arith.truncf %11 : vector<8x128xf32> to vector<8x128xbf16>
    %c0_7 = arith.constant 0 : index
    %c0_8 = arith.constant 0 : index
    %13 = vector.load %arg4[%c0_7, %c0_8] : memref<128x128xbf16, #tpu.memory_space<vmem>>, vector<128x128xbf16>
    %cst_9 = arith.constant dense<0.000000e+00> : vector<8x128xf32>
    %14 = tpu.matmul %12, %13, %cst_9 {dimension_numbers = #tpu.dot_dimension_numbers<[1], [0], [0], [1], [0, 0, 1, 1], [], []>} : vector<8x128xbf16>, vector<128x128xbf16>, vector<8x128xf32> -> vector<8x128xf32>
    %c0_10 = arith.constant 0 : index
    %c0_11 = arith.constant 0 : index
    %15 = vector.load %arg5[%c0_10, %c0_11] : memref<1x128xf32, #tpu.memory_space<vmem>>, vector<1x128xf32>
    %16 = vector.broadcast %15 : vector<1x128xf32> to vector<8x128xf32>
    %17 = arith.addf %14, %16 : vector<8x128xf32>
    %cst_12 = arith.constant 0.000000e+00 : f32
    %18 = vector.broadcast %cst_12 : f32 to vector<8x128xf32>
    %19 = arith.cmpf ogt, %17, %18 : vector<8x128xf32>
    %cst_13 = arith.constant 0.00999999977 : f32
    %20 = vector.broadcast %cst_13 : f32 to vector<8x128xf32>
    %21 = arith.mulf %20, %17 : vector<8x128xf32>
    %22 = arith.select %19, %17, %21 : vector<8x128xi1>, vector<8x128xf32>
    %23 = arith.truncf %22 : vector<8x128xf32> to vector<8x128xbf16>
    %c0_14 = arith.constant 0 : index
    %c0_15 = arith.constant 0 : index
    %24 = vector.load %arg6[%c0_14, %c0_15] : memref<128x1xbf16, #tpu.memory_space<vmem>>, vector<128x1xbf16>
    %cst_16 = arith.constant dense<0.000000e+00> : vector<8x1xf32>
    %25 = tpu.matmul %23, %24, %cst_16 {dimension_numbers = #tpu.dot_dimension_numbers<[1], [0], [0], [1], [0, 0, 1, 1], [], []>} : vector<8x128xbf16>, vector<128x1xbf16>, vector<8x1xf32> -> vector<8x1xf32>
    %c0_17 = arith.constant 0 : index
    %c0_18 = arith.constant 0 : index
    %26 = vector.load %arg7[%c0_17, %c0_18] : memref<1x1xf32, #tpu.memory_space<vmem>>, vector<1x1xf32>
    %27 = vector.broadcast %26 : vector<1x1xf32> to vector<8x1xf32>
    %28 = arith.addf %25, %27 : vector<8x1xf32>
    %cst_19 = arith.constant 5.000000e-01 : f32
    %29 = vector.broadcast %cst_19 : f32 to vector<8x1xf32>
    %30 = arith.mulf %29, %28 : vector<8x1xf32>
    %31 = math.tanh %30 : vector<8x1xf32>
    %cst_20 = arith.constant 1.000000e+00 : f32
    %32 = vector.broadcast %cst_20 : f32 to vector<8x1xf32>
    %33 = arith.addf %32, %31 : vector<8x1xf32>
    %cst_21 = arith.constant 5.000000e-01 : f32
    %34 = vector.broadcast %cst_21 : f32 to vector<8x1xf32>
    %35 = arith.mulf %34, %33 : vector<8x1xf32>
    %c0_22 = arith.constant 0 : index
    %c0_23 = arith.constant 0 : index
    %36 = vector.load %arg8[%c0_22, %c0_23] : memref<8x1xf32, #tpu.memory_space<vmem>>, vector<8x1xf32>
    tpu.vector_store %arg8[%c0_22, %c0_23], %35 {strides = array<i32>} : memref<8x1xf32, #tpu.memory_space<vmem>>, vector<8x1xf32>,
    return
  }
  func.func @transform_0(%arg0: i32) -> (i32, i32) {
    %c0_i32 = arith.constant 0 : i32
    %c0_i32_0 = arith.constant 0 : i32
    return %arg0, %c0_i32 : i32, i32
  }
  func.func @transform_1(%arg0: i32) -> (i32, i32) {
    %c0_i32 = arith.constant 0 : i32
    %c0_i32_0 = arith.constant 0 : i32
    %c0_i32_1 = arith.constant 0 : i32
    return %c0_i32, %c0_i32_0 : i32, i32
  }
  func.func @transform_2(%arg0: i32) -> (i32, i32) {
    %c0_i32 = arith.constant 0 : i32
    %c0_i32_0 = arith.constant 0 : i32
    %c0_i32_1 = arith.constant 0 : i32
    return %c0_i32, %c0_i32_0 : i32, i32
  }
  func.func @transform_3(%arg0: i32) -> (i32, i32) {
    %c0_i32 = arith.constant 0 : i32
    %c0_i32_0 = arith.constant 0 : i32
    %c0_i32_1 = arith.constant 0 : i32
    return %c0_i32, %c0_i32_0 : i32, i32
  }
  func.func @transform_4(%arg0: i32) -> (i32, i32) {
    %c0_i32 = arith.constant 0 : i32
    %c0_i32_0 = arith.constant 0 : i32
    %c0_i32_1 = arith.constant 0 : i32
    return %c0_i32, %c0_i32_0 : i32, i32
  }
  func.func @transform_5(%arg0: i32) -> (i32, i32) {
    %c0_i32 = arith.constant 0 : i32
    %c0_i32_0 = arith.constant 0 : i32
    %c0_i32_1 = arith.constant 0 : i32
    return %c0_i32, %c0_i32_0 : i32, i32
  }
  func.func @transform_6(%arg0: i32) -> (i32, i32) {
    %c0_i32 = arith.constant 0 : i32
    %c0_i32_0 = arith.constant 0 : i32
    %c0_i32_1 = arith.constant 0 : i32
    return %c0_i32, %c0_i32_0 : i32, i32
  }
  func.func @transform_7(%arg0: i32) -> (i32, i32) {
    %c0_i32 = arith.constant 0 : i32
    %c0_i32_0 = arith.constant 0 : i32
    return %arg0, %c0_i32 : i32, i32
  }
}

</mosaic_0001>

<llo_original>
// kernel: simple_discriminator_forward.1
$region0: #{simple_discriminator_forward.1}
  #allocation0 [shape = 'u32[]', space=smem, size = 0x4, offset = 0x4, fixed_abs, tag = 'smem constant byte address 0x4 - core index']
  #allocation1 [shape = 'u32[144,128]{1,0:T(1,128)}', space=vmem, size = 0x12000, scoped, tag = 'internal scratch']
  #allocation2 [shape = 'f32[1,1]{1,0:T(1,128)S(1)}', space=vmem, size = 0x200, scoped, tag = 'scoped memory for simple_discriminator_forward.1']
  %s0 = inlined_call_operand.vmem [shape: f32[8,16], index: 0, kind: input, shape index: {}]
  %s1 = inlined_call_operand.vmem [shape: bf16[16,128], index: 1, kind: input, shape index: {}]
  %s2 = inlined_call_operand.hbm [shape: f32[1,128], index: 2, kind: input, shape index: {}]
  %s3 = inlined_call_operand.vmem [shape: bf16[128,128], index: 3, kind: input, shape index: {}]
  %s4 = inlined_call_operand.vmem [shape: f32[1,128], index: 4, kind: input, shape index: {}]
  %s5 = inlined_call_operand.vmem [shape: bf16[128,1], index: 5, kind: input, shape index: {}]
  %s6 = inlined_call_operand.<no memory space> [shape: f32[1,1], index: 6, kind: input, shape index: {}]
  %s7 = inlined_call_operand.vmem [shape: f32[8,1], index: 7, kind: output, shape index: {}]
  %s8 = sld [smem:[#allocation0]]
  $region42: #{simple_discriminator_forward.1} parent=0
    _
  %s10 = ssub.s32 1, %s8
  %s11 = scalar_select 0, %s10, %s8
  %v12 = vstv %s6
  %13 = vst [vmem:[#allocation2] sm:$0x1] %v12
  $region1: #{simple_discriminator_forward.1} parent=0
    #allocation3 [shape = 'u8[512]{0}', space=vmem, size = 0x400, scoped, tag = 'input window, operand 2, single buffered']
    #allocation4 [shape = 's32[1]{0}', space=sflag, size = 0x4, scoped, tag = 'scoped memory for simple_discriminator_forward.1']
    %14 = vsyncpa [#allocation4], 0
    // Predicated region
    $region2: #{simple_discriminator_forward.1} parent=1 // pred_check
      _
    $region3: #{simple_discriminator_forward.1} parent=1 // pred_check_branch
      %16 = sbr.rel (0) target = $region5
    $region4: #{simple_discriminator_forward.1} parent=1 // pred_region
      _
    $region5: #{simple_discriminator_forward.1} parent=1 // pred_fallthru
      _
    // Predicated region
    $region6: #{simple_discriminator_forward.1} parent=1 // pred_check
      _
    $region7: #{simple_discriminator_forward.1} parent=1 // pred_check_branch
      %18 = sbr.rel (0) target = $region9
    $region8: #{simple_discriminator_forward.1} parent=1 // pred_region
      _
    $region9: #{simple_discriminator_forward.1} parent=1 // pred_fallthru
      _
    // Predicated region
    $region10: #{simple_discriminator_forward.1} parent=1 // pred_check
      _
    $region11: #{simple_discriminator_forward.1} parent=1 // pred_check_branch
      %20 = sbr.rel (0) target = $region13
    $region12: #{simple_discriminator_forward.1} parent=1 // pred_region
      %s22 = ssub.s32 16, 16
      %23 = vsyncadd [#allocation4], %s22
      %s25 = sshll.u32 [#allocation3], 4
      %s26 = int_to_ptr.vmem [resolvable:$true] %s25
      %28 = dma.hbm_to_vmem [thread:$0]  %s2, 16, %s26, [#allocation4]
    $region13: #{simple_discriminator_forward.1} parent=1 // pred_fallthru
      _
    // Predicated region
    $region14: #{simple_discriminator_forward.1} parent=1 // pred_check
      _
    $region15: #{simple_discriminator_forward.1} parent=1 // pred_check_branch
      %30 = sbr.rel (0) target = $region17
    $region16: #{simple_discriminator_forward.1} parent=1 // pred_region
      _
    $region17: #{simple_discriminator_forward.1} parent=1 // pred_fallthru
      _
    // Predicated region
    $region18: #{simple_discriminator_forward.1} parent=1 // pred_check
      _
    $region19: #{simple_discriminator_forward.1} parent=1 // pred_check_branch
      %32 = sbr.rel (0) target = $region21
    $region20: #{simple_discriminator_forward.1} parent=1 // pred_region
      _
    $region21: #{simple_discriminator_forward.1} parent=1 // pred_fallthru
      _
    // Predicated region
    $region22: #{simple_discriminator_forward.1} parent=1 // pred_check
      _
    $region23: #{simple_discriminator_forward.1} parent=1 // pred_check_branch
      %34 = sbr.rel (0) target = $region25
    $region24: #{simple_discriminator_forward.1} parent=1 // pred_region
      _
    $region25: #{simple_discriminator_forward.1} parent=1 // pred_fallthru
      _
    // Predicated region
    $region26: #{simple_discriminator_forward.1} parent=1 // pred_check
      _
    $region27: #{simple_discriminator_forward.1} parent=1 // pred_check_branch
      %36 = sbr.rel (0) target = $region29
    $region28: #{simple_discriminator_forward.1} parent=1 // pred_region
      _
    $region29: #{simple_discriminator_forward.1} parent=1 // pred_fallthru
      _
    // Predicated region
    $region30: #{simple_discriminator_forward.1} parent=1 // pred_check
      _
    $region31: #{simple_discriminator_forward.1} parent=1 // pred_check_branch
      %38 = sbr.rel (0) target = $region33
    $region32: #{simple_discriminator_forward.1} parent=1 // pred_region
      %39 = dma.done [#allocation4], 16
    $region33: #{simple_discriminator_forward.1} parent=1 // pred_fallthru
      _
    %v41 = vld [vmem:[%s0] sm:$0xff]
    %v42 = vpack.c.bf16 %v41, %v41
    %v43 = vld [vmem:[%s1] sm:$0xf]
    %v44 = vld [vmem:[%s1 + $0x4] sm:$0xf]
    %v45 = vld [vmem:[#allocation3] sm:$0x1]
    %v47 = vlaneseq
    %v48 = vshrl.u32 %v47, 7
    %v49 = vsub.s32 0, %v48
    %v50 = vrot.slane %v45, %v49
    %v54 = vunpack.c.l.b16 %v43
    %v55 = vunpack.c.l.b16 %v44
    %v56 = vpack.c.b16 %v55, %v54
    %vm58 = vcmask 130048
    %v60 = vsel %vm58, %v42, 0
    %62 = vmatprep.subr.bf16.mxu0 0
    %63 = vmatpush1.bf16.msra.mxu0 %v56
    %64 = vmatprep.subr.bf16.mxu0 0
    %65 = vmatpush1.bf16.msra.mxu0 0
    %66 = vmatprep.subr.bf16.mxu0 0
    %67 = vmatpush1.bf16.msra.mxu0 0
    %68 = vmatprep.subr.bf16.mxu0 0
    %69 = vmatpush1.bf16.msra.mxu0 0
    %70 = vmatprep.subr.bf16.mxu0 0
    %71 = vmatpush1.bf16.msra.mxu0 0
    %72 = vmatprep.subr.bf16.mxu0 0
    %73 = vmatpush1.bf16.msra.mxu0 0
    %74 = vmatprep.subr.bf16.mxu0 0
    %75 = vmatpush1.bf16.msra.mxu0 0
    %76 = vmatprep.subr.bf16.mxu0 0
    %77 = vmatpush1.bf16.msra.mxu0 0
    %78 = vmatprep.subr.bf16.mxu0 0
    %79 = vmatpush1.bf16.msra.mxu0 0
    %80 = vmatprep.subr.bf16.mxu0 0
    %81 = vmatpush1.bf16.msra.mxu0 0
    %82 = vmatprep.subr.bf16.mxu0 0
    %83 = vmatpush1.bf16.msra.mxu0 0
    %84 = vmatprep.subr.bf16.mxu0 0
    %85 = vmatpush1.bf16.msra.mxu0 0
    %86 = vmatprep.subr.bf16.mxu0 0
    %87 = vmatpush1.bf16.msra.mxu0 0
    %88 = vmatprep.subr.bf16.mxu0 0
    %89 = vmatpush1.bf16.msra.mxu0 0
    %90 = vmatprep.subr.bf16.mxu0 0
    %91 = vmatpush1.bf16.msra.mxu0 0
    %92 = vmatprep.subr.bf16.mxu0 0
    %93 = vmatpush1.bf16.msra.mxu0 0
    %94 = vmatprep.mubr.bf16.mxu0 0
    %95 = vmatmul.mubr.bf16.gmra.mrb[0].mxu0 %v60
    %v96 = vpop.f32.mrb[0].mxu0
    %v97 = vadd.f32 %v50, %v96
    %v98 = vpop.f32.mrb[0].mxu0
    %v99 = vpop.f32.mrb[0].mxu0
    %v100 = vpop.f32.mrb[0].mxu0
    %101 = vdwg.mxu0
    %vm102 = vcmp.gt.f32.partialorder %v97, 0.0
    %v103 = vmul.f32 %v97, 0.01
    %v104 = vsel %vm102, %v97, %v103
    %v105 = vpack.c.bf16 %v104, %v104
    %v106 = vld [vmem:[%s3] sm:$0xf]
    %v107 = vld [vmem:[%s3 + $0x4] sm:$0xf]
    %v108 = vld [vmem:[%s3 + $0x8] sm:$0xf]
    %v109 = vld [vmem:[%s3 + $0xc] sm:$0xf]
    %v110 = vld [vmem:[%s3 + $0x10] sm:$0xf]
    %v111 = vld [vmem:[%s3 + $0x14] sm:$0xf]
    %v112 = vld [vmem:[%s3 + $0x18] sm:$0xf]
    %v113 = vld [vmem:[%s3 + $0x1c] sm:$0xf]
    %v114 = vld [vmem:[%s3 + $0x20] sm:$0xf]
    %v115 = vld [vmem:[%s3 + $0x24] sm:$0xf]
    %v116 = vld [vmem:[%s3 + $0x28] sm:$0xf]
    %v117 = vld [vmem:[%s3 + $0x2c] sm:$0xf]
    %v118 = vld [vmem:[%s3 + $0x30] sm:$0xf]
    %v119 = vld [vmem:[%s3 + $0x34] sm:$0xf]
    %v120 = vld [vmem:[%s3 + $0x38] sm:$0xf]
    %v121 = vld [vmem:[%s3 + $0x3c] sm:$0xf]
    %v122 = vld [vmem:[%s4] sm:$0x1]
    %v124 = vlaneseq
    %v125 = vshrl.u32 %v124, 7
    %v126 = vsub.s32 0, %v125
    %v127 = vrot.slane %v122, %v126
    %v145 = vunpack.c.l.b16 %v106
    %v146 = vunpack.c.l.b16 %v107
    %v147 = vunpack.c.l.b16 %v108
    %v148 = vunpack.c.l.b16 %v109
    %v149 = vunpack.c.l.b16 %v110
    %v150 = vunpack.c.l.b16 %v111
    %v151 = vunpack.c.l.b16 %v112
    %v152 = vunpack.c.l.b16 %v113
    %v153 = vunpack.c.l.b16 %v114
    %v154 = vunpack.c.l.b16 %v115
    %v155 = vunpack.c.l.b16 %v116
    %v156 = vunpack.c.l.b16 %v117
    %v157 = vunpack.c.l.b16 %v118
    %v158 = vunpack.c.l.b16 %v119
    %v159 = vunpack.c.l.b16 %v120
    %v160 = vunpack.c.l.b16 %v121
    %v161 = vpack.c.b16 %v146, %v145
    %v162 = vpack.c.b16 %v148, %v147
    %v163 = vpack.c.b16 %v150, %v149
    %v164 = vpack.c.b16 %v152, %v151
    %v165 = vpack.c.b16 %v154, %v153
    %v166 = vpack.c.b16 %v156, %v155
    %v167 = vpack.c.b16 %v158, %v157
    %v168 = vpack.c.b16 %v160, %v159
    %177 = vmatprep.subr.bf16.mxu0 0
    %178 = vmatpush1.bf16.msra.mxu0 %v161
    %179 = vmatprep.subr.bf16.mxu0 0
    %180 = vmatpush1.bf16.msra.mxu0 %v162
    %181 = vmatprep.subr.bf16.mxu0 0
    %182 = vmatpush1.bf16.msra.mxu0 %v163
    %183 = vmatprep.subr.bf16.mxu0 0
    %184 = vmatpush1.bf16.msra.mxu0 %v164
    %185 = vmatprep.subr.bf16.mxu0 0
    %186 = vmatpush1.bf16.msra.mxu0 %v165
    %187 = vmatprep.subr.bf16.mxu0 0
    %188 = vmatpush1.bf16.msra.mxu0 %v166
    %189 = vmatprep.subr.bf16.mxu0 0
    %190 = vmatpush1.bf16.msra.mxu0 %v167
    %191 = vmatprep.subr.bf16.mxu0 0
    %192 = vmatpush1.bf16.msra.mxu0 %v168
    %193 = vmatprep.subr.bf16.mxu0 0
    %194 = vmatpush1.bf16.msra.mxu0 0
    %195 = vmatprep.subr.bf16.mxu0 0
    %196 = vmatpush1.bf16.msra.mxu0 0
    %197 = vmatprep.subr.bf16.mxu0 0
    %198 = vmatpush1.bf16.msra.mxu0 0
    %199 = vmatprep.subr.bf16.mxu0 0
    %200 = vmatpush1.bf16.msra.mxu0 0
    %201 = vmatprep.subr.bf16.mxu0 0
    %202 = vmatpush1.bf16.msra.mxu0 0
    %203 = vmatprep.subr.bf16.mxu0 0
    %204 = vmatpush1.bf16.msra.mxu0 0
    %205 = vmatprep.subr.bf16.mxu0 0
    %206 = vmatpush1.bf16.msra.mxu0 0
    %207 = vmatprep.subr.bf16.mxu0 0
    %208 = vmatpush1.bf16.msra.mxu0 0
    %209 = vmatprep.mubr.bf16.mxu0 0
    %210 = vmatmul.mubr.bf16.gmra.mrb[0].mxu0 %v105
    %v211 = vpop.f32.mrb[0].mxu0
    %v212 = vadd.f32 %v127, %v211
    %v213 = vpop.f32.mrb[0].mxu0
    %v214 = vpop.f32.mrb[0].mxu0
    %v215 = vpop.f32.mrb[0].mxu0
    %216 = vdwg.mxu0
    %vm217 = vcmp.gt.f32.partialorder %v212, 0.0
    %v218 = vmul.f32 %v212, 0.01
    %v219 = vsel %vm217, %v212, %v218
    %v220 = vpack.c.bf16 %v219, %v219
    %v221 = vld [vmem:[%s5] sm:$0xf]
    %v222 = vld [vmem:[%s5 + $0x4] sm:$0xf]
    %v223 = vld [vmem:[%s5 + $0x8] sm:$0xf]
    %v224 = vld [vmem:[%s5 + $0xc] sm:$0xf]
    %v225 = vld [vmem:[%s5 + $0x10] sm:$0xf]
    %v226 = vld [vmem:[%s5 + $0x14] sm:$0xf]
    %v227 = vld [vmem:[%s5 + $0x18] sm:$0xf]
    %v228 = vld [vmem:[%s5 + $0x1c] sm:$0xf]
    %v229 = vld [vmem:[%s5 + $0x20] sm:$0xf]
    %v230 = vld [vmem:[%s5 + $0x24] sm:$0xf]
    %v231 = vld [vmem:[%s5 + $0x28] sm:$0xf]
    %v232 = vld [vmem:[%s5 + $0x2c] sm:$0xf]
    %v233 = vld [vmem:[%s5 + $0x30] sm:$0xf]
    %v234 = vld [vmem:[%s5 + $0x34] sm:$0xf]
    %v235 = vld [vmem:[%s5 + $0x38] sm:$0xf]
    %v236 = vld [vmem:[%s5 + $0x3c] sm:$0xf]
    %v237 = vld [vmem:[#allocation2] sm:$0x1]
    %v239 = vlaneseq
    %v240 = vshrl.u32 %v239, 7
    %v241 = vsub.s32 0, %v240
    %v242 = vrot.slane %v237, %v241
    %v260 = vunpack.c.l.b16 %v221
    %v261 = vunpack.c.l.b16 %v222
    %v262 = vunpack.c.l.b16 %v223
    %v263 = vunpack.c.l.b16 %v224
    %v264 = vunpack.c.l.b16 %v225
    %v265 = vunpack.c.l.b16 %v226
    %v266 = vunpack.c.l.b16 %v227
    %v267 = vunpack.c.l.b16 %v228
    %v268 = vunpack.c.l.b16 %v229
    %v269 = vunpack.c.l.b16 %v230
    %v270 = vunpack.c.l.b16 %v231
    %v271 = vunpack.c.l.b16 %v232
    %v272 = vunpack.c.l.b16 %v233
    %v273 = vunpack.c.l.b16 %v234
    %v274 = vunpack.c.l.b16 %v235
    %v275 = vunpack.c.l.b16 %v236
    %v276 = vpack.c.b16 %v261, %v260
    %v277 = vpack.c.b16 %v263, %v262
    %v278 = vpack.c.b16 %v265, %v264
    %v279 = vpack.c.b16 %v267, %v266
    %v280 = vpack.c.b16 %v269, %v268
    %v281 = vpack.c.b16 %v271, %v270
    %v282 = vpack.c.b16 %v273, %v272
    %v283 = vpack.c.b16 %v275, %v274
    %292 = vmatprep.subr.bf16.mxu0 0
    %293 = vmatpush1.bf16.msra.mxu0 %v276
    %294 = vmatprep.subr.bf16.mxu0 0
    %295 = vmatpush1.bf16.msra.mxu0 %v277
    %296 = vmatprep.subr.bf16.mxu0 0
    %297 = vmatpush1.bf16.msra.mxu0 %v278
    %298 = vmatprep.subr.bf16.mxu0 0
    %299 = vmatpush1.bf16.msra.mxu0 %v279
    %300 = vmatprep.subr.bf16.mxu0 0
    %301 = vmatpush1.bf16.msra.mxu0 %v280
    %302 = vmatprep.subr.bf16.mxu0 0
    %303 = vmatpush1.bf16.msra.mxu0 %v281
    %304 = vmatprep.subr.bf16.mxu0 0
    %305 = vmatpush1.bf16.msra.mxu0 %v282
    %306 = vmatprep.subr.bf16.mxu0 0
    %307 = vmatpush1.bf16.msra.mxu0 %v283
    %308 = vmatprep.subr.bf16.mxu0 0
    %309 = vmatpush1.bf16.msra.mxu0 0
    %310 = vmatprep.subr.bf16.mxu0 0
    %311 = vmatpush1.bf16.msra.mxu0 0
    %312 = vmatprep.subr.bf16.mxu0 0
    %313 = vmatpush1.bf16.msra.mxu0 0
    %314 = vmatprep.subr.bf16.mxu0 0
    %315 = vmatpush1.bf16.msra.mxu0 0
    %316 = vmatprep.subr.bf16.mxu0 0
    %317 = vmatpush1.bf16.msra.mxu0 0
    %318 = vmatprep.subr.bf16.mxu0 0
    %319 = vmatpush1.bf16.msra.mxu0 0
    %320 = vmatprep.subr.bf16.mxu0 0
    %321 = vmatpush1.bf16.msra.mxu0 0
    %322 = vmatprep.subr.bf16.mxu0 0
    %323 = vmatpush1.bf16.msra.mxu0 0
    %324 = vmatprep.mubr.bf16.mxu0 0
    %325 = vmatmul.mubr.bf16.gmra.mrb[0].mxu0 %v220
    %v326 = vpop.f32.mrb[0].mxu0
    %v327 = vadd.f32 %v242, %v326
    %v328 = vpop.f32.mrb[0].mxu0
    %v329 = vpop.f32.mrb[0].mxu0
    %v330 = vpop.f32.mrb[0].mxu0
    %331 = vdwg.mxu0
    %v332 = vmul.f32 %v327, 0.5
    %v333 = vtanh.pop %v332
    %v334 = vadd.f32 %v333, 1.0
    %v335 = vmul.f32 %v334, 0.5
    %vm336 = vcmask 7168
    %337 = vst.msk [vmem:[%s7] sm:$0xff] %vm336, %v335
    // Predicated region
    $region34: #{simple_discriminator_forward.1} parent=1 // pred_check
      _
    $region35: #{simple_discriminator_forward.1} parent=1 // pred_check_branch
      %339 = sbr.rel (0) target = $region37
    $region36: #{simple_discriminator_forward.1} parent=1 // pred_region
      _
    $region37: #{simple_discriminator_forward.1} parent=1 // pred_fallthru
      _
    // Predicated region
    $region38: #{simple_discriminator_forward.1} parent=1 // pred_check
      _
    $region39: #{simple_discriminator_forward.1} parent=1 // pred_check_branch
      %341 = sbr.rel (0) target = $region41
    $region40: #{simple_discriminator_forward.1} parent=1 // pred_region
      _
    $region41: #{simple_discriminator_forward.1} parent=1 // pred_fallthru
      _
    %342 = vsyncpa [#allocation4], 1

</llo_original>
